<compile_context>
chip_gen: v6e
topology: v6e:2x2x1
jax: 0.10.0
libtpu: 0.0.40
codegen_flags: <defaults>
</compile_context>

<pallas_src>
import jax
import jax.numpy as jnp
from jax.experimental import pallas as pl
from jax.experimental.pallas import tpu as pltpu


def _round_up(x, m):
    return ((x + m - 1) // m) * m


def decoder_kernel(x_ref, w1_ref, b1_ref, w2_ref, b2_ref, o_ref):
    # Hoist bias reads once per grid step (no per-op re-broadcasts).
    b1 = b1_ref[...]                      # f32 [1, Hp]
    b2 = b2_ref[...]                      # f32 [1, Op]

    # hidden = relu(x @ W1 + b1)   -- bf16 MXU operands, f32 accumulation.
    h = jnp.dot(x_ref[...], w1_ref[...], preferred_element_type=jnp.float32)
    h = jnp.maximum(h + b1, 0.0)

    # out = sigmoid(h @ W2 + b2)   -- cast h to bf16 only at the MXU input.
    z = jnp.dot(h.astype(jnp.bfloat16), w2_ref[...],
                preferred_element_type=jnp.float32)
    z = z + b2
    # sigmoid(z) = 1 / (1 + exp(-z)); exp -> EUP, reciprocal (approx) -> EUP.
    o_ref[...] = pl.reciprocal(1.0 + jnp.exp(-z), approx=True).astype(o_ref.dtype)


def decoder_forward(x, w1, b1, w2, b2, *, tile_b=256):
    """x: [B, latent], w1: [latent, hidden], b1: [1, hidden],
       w2: [hidden, output], b2: [1, output]  ->  [B, output] (float32)."""
    B, latent = x.shape
    hidden = w1.shape[1]
    out_dim = w2.shape[1]

    # Pad feature dims to lane width (128); pad batch to the (sublane-aligned) tile.
    Lp = _round_up(latent, 128)
    Hp = _round_up(hidden, 128)
    Op = _round_up(out_dim, 128)
    tile_b = min(tile_b, _round_up(B, 8))
    Bp = _round_up(B, tile_b)

    xp = jnp.zeros((Bp, Lp), jnp.float32).at[:B, :latent].set(x)
    w1p = jnp.zeros((Lp, Hp), jnp.float32).at[:latent, :hidden].set(w1)
    b1p = jnp.zeros((1, Hp), jnp.float32).at[:, :hidden].set(b1)
    w2p = jnp.zeros((Hp, Op), jnp.float32).at[:hidden, :out_dim].set(w2)
    b2p = jnp.zeros((1, Op), jnp.float32).at[:, :out_dim].set(b2)

    # bf16 into the MXU; biases stay f32 (elementwise chain is f32).
    xp = xp.astype(jnp.bfloat16)
    w1p = w1p.astype(jnp.bfloat16)
    w2p = w2p.astype(jnp.bfloat16)

    grid = (pl.cdiv(Bp, tile_b),)

    # VMEM budget: double-buffered x/out tiles + resident weights/biases + hidden
    # intermediate, with headroom; capped below v7x's 64 MiB physical VMEM.
    need = (2 * (tile_b * Lp * 2 + tile_b * Op * 4)      # x tile (bf16), out tile (f32)
            + Lp * Hp * 2 + Hp * Op * 2                  # resident bf16 weights
            + (Hp + Op) * 4                              # resident f32 biases
            + 2 * tile_b * Hp * 4)                       # hidden intermediate (f32)
    vmem_limit = min(max(int(1.5 * need) + (4 << 20), 16 << 20), 48 << 20)

    out = pl.pallas_call(
        decoder_kernel,
        out_shape=jax.ShapeDtypeStruct((Bp, Op), jnp.float32),
        grid=grid,
        in_specs=[
            pl.BlockSpec((tile_b, Lp), lambda i: (i, 0)),   # x: tiled on batch
            pl.BlockSpec((Lp, Hp), lambda i: (0, 0)),       # W1: VMEM-resident
            pl.BlockSpec((1, Hp), lambda i: (0, 0)),        # b1: VMEM-resident
            pl.BlockSpec((Hp, Op), lambda i: (0, 0)),       # W2: VMEM-resident
            pl.BlockSpec((1, Op), lambda i: (0, 0)),        # b2: VMEM-resident
        ],
        out_specs=pl.BlockSpec((tile_b, Op), lambda i: (i, 0)),
        compiler_params=pltpu.CompilerParams(
            dimension_semantics=("parallel",),
            vmem_limit_bytes=vmem_limit,
        ),
    )(xp, w1p, b1p, w2p, b2p)

    return out[:B, :out_dim]


def init_params(key, latent_dim, hidden_dim, output_dim):
    """Deterministic synthetic init (uniform like PyTorch's default Linear init)."""
    k1, k2, k3, k4 = jax.random.split(key, 4)
    bound1 = 1.0 / (latent_dim ** 0.5)
    bound2 = 1.0 / (hidden_dim ** 0.5)
    w1 = jax.random.uniform(k1, (latent_dim, hidden_dim), jnp.float32, -bound1, bound1)
    b1 = jax.random.uniform(k2, (1, hidden_dim), jnp.float32, -bound1, bound1)
    w2 = jax.random.uniform(k3, (hidden_dim, output_dim), jnp.float32, -bound2, bound2)
    b2 = jax.random.uniform(k4, (1, output_dim), jnp.float32, -bound2, bound2)
    return w1, b1, w2, b2


def _check(key, batch, latent_dim, hidden_dim, output_dim):
    k_x, k_p = jax.random.split(key)
    x = jax.random.normal(k_x, (batch, latent_dim), jnp.float32)
    w1, b1, w2, b2 = init_params(k_p, latent_dim, hidden_dim, output_dim)

    out = decoder_forward(x, w1, b1, w2, b2)
    out = jax.block_until_ready(out)

    # Reference in plain JAX (same math as the PyTorch forward), f32.
    ref = jax.nn.sigmoid(jnp.maximum(x @ w1 + b1, 0.0) @ w2 + b2)
    assert out.shape == (batch, output_dim)
    # bf16 MXU operands + approx reciprocal -> loosen tolerance vs f32 reference.
    assert jnp.allclose(out, ref, atol=2e-2, rtol=2e-2), "mismatch vs reference"


if __name__ == "__main__":
    key = jax.random.PRNGKey(0)

    # Toy size matching the original usage pattern.
    _check(key, batch=8, latent_dim=16, hidden_dim=32, output_dim=64)
    # Exercise batch tiling + feature/batch padding paths.
    _check(jax.random.fold_in(key, 1), batch=37, latent_dim=20,
           hidden_dim=48, output_dim=10)

    print("KERNEL_OK")
</pallas_src>

<mosaic_0001>
module attributes {stable_mosaic.version = 11 : i64} {
  func.func @decoder_kernel(%arg0: i32, %arg1: memref<8x128xbf16, #tpu.memory_space<vmem>>, %arg2: memref<128x128xbf16, #tpu.memory_space<vmem>>, %arg3: memref<1x128xf32, #tpu.memory_space<vmem>>, %arg4: memref<128x128xbf16, #tpu.memory_space<vmem>>, %arg5: memref<1x128xf32, #tpu.memory_space<vmem>>, %arg6: memref<8x128xf32, #tpu.memory_space<vmem>>) attributes {dimension_semantics = [#tpu.dimension_semantics<parallel>], iteration_bounds = array<i64: 1>, scalar_prefetch = 0 : i64, scratch_operands = 0 : i64, tpu.core_type = #tpu.core_type<tc>, window_params = [{transform_indices = @transform_0, window_bounds = array<i64: 8, 128>}, {pipeline_mode = #tpu.pipeline_mode<synchronous>, transform_indices = @transform_1, window_bounds = array<i64: 128, 128>}, {pipeline_mode = #tpu.pipeline_mode<synchronous>, transform_indices = @transform_2, window_bounds = array<i64: 1, 128>}, {pipeline_mode = #tpu.pipeline_mode<synchronous>, transform_indices = @transform_3, window_bounds = array<i64: 128, 128>}, {pipeline_mode = #tpu.pipeline_mode<synchronous>, transform_indices = @transform_4, window_bounds = array<i64: 1, 128>}, {transform_indices = @transform_5, window_bounds = array<i64: 8, 128>}]} {
    %c0 = arith.constant 0 : index
    %c0_0 = arith.constant 0 : index
    %0 = vector.load %arg3[%c0, %c0_0] : memref<1x128xf32, #tpu.memory_space<vmem>>, vector<1x128xf32>
    %c0_1 = arith.constant 0 : index
    %c0_2 = arith.constant 0 : index
    %1 = vector.load %arg5[%c0_1, %c0_2] : memref<1x128xf32, #tpu.memory_space<vmem>>, vector<1x128xf32>
    %c0_3 = arith.constant 0 : index
    %c0_4 = arith.constant 0 : index
    %2 = vector.load %arg1[%c0_3, %c0_4] : memref<8x128xbf16, #tpu.memory_space<vmem>>, vector<8x128xbf16>
    %c0_5 = arith.constant 0 : index
    %c0_6 = arith.constant 0 : index
    %3 = vector.load %arg2[%c0_5, %c0_6] : memref<128x128xbf16, #tpu.memory_space<vmem>>, vector<128x128xbf16>
    %cst = arith.constant dense<0.000000e+00> : vector<8x128xf32>
    %4 = tpu.matmul %2, %3, %cst {dimension_numbers = #tpu.dot_dimension_numbers<[1], [0], [0], [1], [0, 0, 1, 1], [], []>} : vector<8x128xbf16>, vector<128x128xbf16>, vector<8x128xf32> -> vector<8x128xf32>
    %5 = vector.broadcast %0 : vector<1x128xf32> to vector<8x128xf32>
    %6 = arith.addf %4, %5 : vector<8x128xf32>
    %cst_7 = arith.constant 0.000000e+00 : f32
    %7 = vector.broadcast %cst_7 : f32 to vector<8x128xf32>
    %8 = arith.maximumf %6, %7 : vector<8x128xf32>
    %9 = arith.truncf %8 : vector<8x128xf32> to vector<8x128xbf16>
    %c0_8 = arith.constant 0 : index
    %c0_9 = arith.constant 0 : index
    %10 = vector.load %arg4[%c0_8, %c0_9] : memref<128x128xbf16, #tpu.memory_space<vmem>>, vector<128x128xbf16>
    %cst_10 = arith.constant dense<0.000000e+00> : vector<8x128xf32>
    %11 = tpu.matmul %9, %10, %cst_10 {dimension_numbers = #tpu.dot_dimension_numbers<[1], [0], [0], [1], [0, 0, 1, 1], [], []>} : vector<8x128xbf16>, vector<128x128xbf16>, vector<8x128xf32> -> vector<8x128xf32>
    %12 = vector.broadcast %1 : vector<1x128xf32> to vector<8x128xf32>
    %13 = arith.addf %11, %12 : vector<8x128xf32>
    %cst_11 = arith.constant 0.000000e+00 : f32
    %14 = vector.broadcast %cst_11 : f32 to vector<8x128xf32>
    %15 = arith.subf %14, %13 : vector<8x128xf32>
    %16 = math.exp %15 : vector<8x128xf32>
    %cst_12 = arith.constant 1.000000e+00 : f32
    %17 = vector.broadcast %cst_12 : f32 to vector<8x128xf32>
    %18 = arith.addf %17, %16 : vector<8x128xf32>
    %19 = tpu.reciprocal %18 {approx = true} : vector<8x128xf32> -> vector<8x128xf32>
    %c0_13 = arith.constant 0 : index
    %c0_14 = arith.constant 0 : index
    %20 = vector.load %arg6[%c0_13, %c0_14] : memref<8x128xf32, #tpu.memory_space<vmem>>, vector<8x128xf32>
    tpu.vector_store %arg6[%c0_13, %c0_14], %19 {strides = array<i32>} : memref<8x128xf32, #tpu.memory_space<vmem>>, vector<8x128xf32>,
    return
  }
  func.func @transform_0(%arg0: i32) -> (i32, i32) {
    %c0_i32 = arith.constant 0 : i32
    %c0_i32_0 = arith.constant 0 : i32
    return %arg0, %c0_i32 : i32, i32
  }
  func.func @transform_1(%arg0: i32) -> (i32, i32) {
    %c0_i32 = arith.constant 0 : i32
    %c0_i32_0 = arith.constant 0 : i32
    %c0_i32_1 = arith.constant 0 : i32
    return %c0_i32, %c0_i32_0 : i32, i32
  }
  func.func @transform_2(%arg0: i32) -> (i32, i32) {
    %c0_i32 = arith.constant 0 : i32
    %c0_i32_0 = arith.constant 0 : i32
    %c0_i32_1 = arith.constant 0 : i32
    return %c0_i32, %c0_i32_0 : i32, i32
  }
  func.func @transform_3(%arg0: i32) -> (i32, i32) {
    %c0_i32 = arith.constant 0 : i32
    %c0_i32_0 = arith.constant 0 : i32
    %c0_i32_1 = arith.constant 0 : i32
    return %c0_i32, %c0_i32_0 : i32, i32
  }
  func.func @transform_4(%arg0: i32) -> (i32, i32) {
    %c0_i32 = arith.constant 0 : i32
    %c0_i32_0 = arith.constant 0 : i32
    %c0_i32_1 = arith.constant 0 : i32
    return %c0_i32, %c0_i32_0 : i32, i32
  }
  func.func @transform_5(%arg0: i32) -> (i32, i32) {
    %c0_i32 = arith.constant 0 : i32
    %c0_i32_0 = arith.constant 0 : i32
    return %arg0, %c0_i32 : i32, i32
  }
}

</mosaic_0001>

<llo_original>
// kernel: tpu_custom_call.1
$region0: #{tpu_custom_call.1}
  #allocation0 [shape = 'u32[]', space=smem, size = 0x4, offset = 0x4, fixed_abs, tag = 'smem constant byte address 0x4 - core index']
  #allocation1 [shape = 'u32[144,128]{1,0:T(1,128)}', space=vmem, size = 0x12000, scoped, tag = 'internal scratch']
  %s0 = inlined_call_operand.hbm [shape: bf16[8,128], index: 0, kind: input, shape index: {}]
  %s1 = inlined_call_operand.hbm [shape: bf16[128,128], index: 1, kind: input, shape index: {}]
  %s2 = inlined_call_operand.vmem [shape: f32[1,128], index: 2, kind: input, shape index: {}]
  %s3 = inlined_call_operand.hbm [shape: bf16[128,128], index: 3, kind: input, shape index: {}]
  %s4 = inlined_call_operand.vmem [shape: f32[1,128], index: 4, kind: input, shape index: {}]
  %s5 = inlined_call_operand.hbm [shape: f32[8,128], index: 5, kind: output, shape index: {}]
  %s6 = sld [smem:[#allocation0]]
  $region42: #{tpu_custom_call.1} parent=0
    _
  %s8 = ssub.s32 1, %s6
  %s9 = scalar_select 0, %s8, %s6
  $region1: #{tpu_custom_call.1} parent=0
    #allocation2 [shape = 'u8[2048]{0}', space=vmem, size = 0x800, scoped, tag = 'input window, operand 0, single buffered']
    #allocation3 [shape = 's32[1]{0}', space=sflag, size = 0x4, scoped, tag = 'scoped memory for tpu_custom_call.1']
    #allocation4 [shape = 's32[1]{0}', space=sflag, size = 0x4, scoped, tag = 'scoped memory for tpu_custom_call.1']
    #allocation5 [shape = 'u8[32768]{0}', space=vmem, size = 0x8000, scoped, tag = 'input window, operand 1, single buffered']
    #allocation6 [shape = 's32[1]{0}', space=sflag, size = 0x4, scoped, tag = 'scoped memory for tpu_custom_call.1']
    #allocation7 [shape = 'u8[32768]{0}', space=vmem, size = 0x8000, scoped, tag = 'input window, operand 3, single buffered']
    #allocation8 [shape = 'u8[4096]{0}', space=vmem, size = 0x1000, scoped, tag = 'output window, operand 0, single buffered']
    %10 = vsyncpa [#allocation3], 0
    %11 = vsyncpa [#allocation6], 0
    %12 = vsyncpa [#allocation4], 0
    // Predicated region
    $region2: #{tpu_custom_call.1} parent=1 // pred_check
      _
    $region3: #{tpu_custom_call.1} parent=1 // pred_check_branch
      %14 = sbr.rel (0) target = $region5
    $region4: #{tpu_custom_call.1} parent=1 // pred_region
      %s16 = ssub.s32 64, 64
      %17 = vsyncadd [#allocation3], %s16
      %s19 = sshll.u32 [#allocation2], 4
      %s20 = int_to_ptr.vmem [resolvable:$true] %s19
      %22 = dma.hbm_to_vmem [thread:$0]  %s0, 64, %s20, [#allocation3]
    $region5: #{tpu_custom_call.1} parent=1 // pred_fallthru
      _
    // Predicated region
    $region6: #{tpu_custom_call.1} parent=1 // pred_check
      _
    $region7: #{tpu_custom_call.1} parent=1 // pred_check_branch
      %24 = sbr.rel (0) target = $region9
    $region8: #{tpu_custom_call.1} parent=1 // pred_region
      %s26 = ssub.s32 1024, 1024
      %27 = vsyncadd [#allocation6], %s26
      %s28 = sshll.u32 [#allocation5], 4
      %s29 = int_to_ptr.vmem [resolvable:$true] %s28
      %34 = dma.hbm_to_vmem [thread:$0]  %s1, 1024, %s29, [#allocation6], 64, 64, 4
    $region9: #{tpu_custom_call.1} parent=1 // pred_fallthru
      _
    // Predicated region
    $region10: #{tpu_custom_call.1} parent=1 // pred_check
      _
    $region11: #{tpu_custom_call.1} parent=1 // pred_check_branch
      %36 = sbr.rel (0) target = $region13
    $region12: #{tpu_custom_call.1} parent=1 // pred_region
      _
    $region13: #{tpu_custom_call.1} parent=1 // pred_fallthru
      _
    // Predicated region
    $region14: #{tpu_custom_call.1} parent=1 // pred_check
      _
    $region15: #{tpu_custom_call.1} parent=1 // pred_check_branch
      %38 = sbr.rel (0) target = $region17
    $region16: #{tpu_custom_call.1} parent=1 // pred_region
      %s40 = ssub.s32 1024, 1024
      %41 = vsyncadd [#allocation6], %s40
      %s42 = sshll.u32 [#allocation7], 4
      %s43 = int_to_ptr.vmem [resolvable:$true] %s42
      %48 = dma.hbm_to_vmem [thread:$0]  %s3, 1024, %s43, [#allocation6], 64, 64, 4
    $region17: #{tpu_custom_call.1} parent=1 // pred_fallthru
      _
    // Predicated region
    $region18: #{tpu_custom_call.1} parent=1 // pred_check
      _
    $region19: #{tpu_custom_call.1} parent=1 // pred_check_branch
      %50 = sbr.rel (0) target = $region21
    $region20: #{tpu_custom_call.1} parent=1 // pred_region
      _
    $region21: #{tpu_custom_call.1} parent=1 // pred_fallthru
      _
    // Predicated region
    $region22: #{tpu_custom_call.1} parent=1 // pred_check
      _
    $region23: #{tpu_custom_call.1} parent=1 // pred_check_branch
      %52 = sbr.rel (0) target = $region25
    $region24: #{tpu_custom_call.1} parent=1 // pred_region
      %53 = dma.done [#allocation3], 64
    $region25: #{tpu_custom_call.1} parent=1 // pred_fallthru
      _
    // Predicated region
    $region26: #{tpu_custom_call.1} parent=1 // pred_check
      _
    $region27: #{tpu_custom_call.1} parent=1 // pred_check_branch
      %55 = sbr.rel (0) target = $region29
    $region28: #{tpu_custom_call.1} parent=1 // pred_region
      %56 = dma.done [#allocation6], 1024
    $region29: #{tpu_custom_call.1} parent=1 // pred_fallthru
      _
    // Predicated region
    $region30: #{tpu_custom_call.1} parent=1 // pred_check
      _
    $region31: #{tpu_custom_call.1} parent=1 // pred_check_branch
      %58 = sbr.rel (0) target = $region33
    $region32: #{tpu_custom_call.1} parent=1 // pred_region
      %59 = dma.done [#allocation6], 1024
    $region33: #{tpu_custom_call.1} parent=1 // pred_fallthru
      _
    %v61 = vld [vmem:[%s2] sm:$0x1]
    %v62 = vld [vmem:[%s4] sm:$0x1]
    %v63 = vld [vmem:[#allocation2] sm:$0xf]
    %v64 = vld [vmem:[#allocation5] sm:$0xf]
    %v65 = vld [vmem:[#allocation5 + $0x4] sm:$0xf]
    %v66 = vld [vmem:[#allocation5 + $0x8] sm:$0xf]
    %v67 = vld [vmem:[#allocation5 + $0xc] sm:$0xf]
    %v68 = vld [vmem:[#allocation5 + $0x10] sm:$0xf]
    %v69 = vld [vmem:[#allocation5 + $0x14] sm:$0xf]
    %v70 = vld [vmem:[#allocation5 + $0x18] sm:$0xf]
    %v71 = vld [vmem:[#allocation5 + $0x1c] sm:$0xf]
    %v72 = vld [vmem:[#allocation5 + $0x20] sm:$0xf]
    %v73 = vld [vmem:[#allocation5 + $0x24] sm:$0xf]
    %v74 = vld [vmem:[#allocation5 + $0x28] sm:$0xf]
    %v75 = vld [vmem:[#allocation5 + $0x2c] sm:$0xf]
    %v76 = vld [vmem:[#allocation5 + $0x30] sm:$0xf]
    %v77 = vld [vmem:[#allocation5 + $0x34] sm:$0xf]
    %v78 = vld [vmem:[#allocation5 + $0x38] sm:$0xf]
    %v79 = vld [vmem:[#allocation5 + $0x3c] sm:$0xf]
    %v81 = vlaneseq
    %v82 = vshrl.u32 %v81, 7
    %v83 = vsub.s32 0, %v82
    %v84 = vrot.slane %v61, %v83
    %v102 = vunpack.c.l.b16 %v64
    %v103 = vunpack.c.l.b16 %v65
    %v104 = vunpack.c.l.b16 %v66
    %v105 = vunpack.c.l.b16 %v67
    %v106 = vunpack.c.l.b16 %v68
    %v107 = vunpack.c.l.b16 %v69
    %v108 = vunpack.c.l.b16 %v70
    %v109 = vunpack.c.l.b16 %v71
    %v110 = vunpack.c.l.b16 %v72
    %v111 = vunpack.c.l.b16 %v73
    %v112 = vunpack.c.l.b16 %v74
    %v113 = vunpack.c.l.b16 %v75
    %v114 = vunpack.c.l.b16 %v76
    %v115 = vunpack.c.l.b16 %v77
    %v116 = vunpack.c.l.b16 %v78
    %v117 = vunpack.c.l.b16 %v79
    %v118 = vpack.c.b16 %v103, %v102
    %v119 = vpack.c.b16 %v105, %v104
    %v120 = vpack.c.b16 %v107, %v106
    %v121 = vpack.c.b16 %v109, %v108
    %v122 = vpack.c.b16 %v111, %v110
    %v123 = vpack.c.b16 %v113, %v112
    %v124 = vpack.c.b16 %v115, %v114
    %v125 = vpack.c.b16 %v117, %v116
    %134 = vmatprep.subr.bf16.mxu0 0
    %135 = vmatpush1.bf16.msra.mxu0 %v125
    %136 = vmatprep.subr.bf16.mxu0 0
    %137 = vmatpush1.bf16.msra.mxu0 %v124
    %138 = vmatprep.subr.bf16.mxu0 0
    %139 = vmatpush1.bf16.msra.mxu0 %v123
    %140 = vmatprep.subr.bf16.mxu0 0
    %141 = vmatpush1.bf16.msra.mxu0 %v122
    %142 = vmatprep.subr.bf16.mxu0 0
    %143 = vmatpush1.bf16.msra.mxu0 %v121
    %144 = vmatprep.subr.bf16.mxu0 0
    %145 = vmatpush1.bf16.msra.mxu0 %v120
    %146 = vmatprep.subr.bf16.mxu0 0
    %147 = vmatpush1.bf16.msra.mxu0 %v119
    %148 = vmatprep.subr.bf16.mxu0 0
    %149 = vmatpush1.bf16.msra.mxu0 %v118
    %150 = vmatprep.subr.bf16.mxu0 0
    %151 = vmatpush2.bf16.msra.mxu0 0
    %152 = vmatprep.subr.bf16.mxu0 0
    %153 = vmatpush2.bf16.msra.mxu0 0
    %154 = vmatprep.subr.bf16.mxu0 0
    %155 = vmatpush2.bf16.msra.mxu0 0
    %156 = vmatprep.subr.bf16.mxu0 0
    %157 = vmatpush2.bf16.msra.mxu0 0
    %158 = vmatprep.subr.bf16.mxu0 0
    %159 = vmatpush2.bf16.msra.mxu0 0
    %160 = vmatprep.subr.bf16.mxu0 0
    %161 = vmatpush2.bf16.msra.mxu0 0
    %162 = vmatprep.subr.bf16.mxu0 0
    %163 = vmatpush2.bf16.msra.mxu0 0
    %164 = vmatprep.subr.bf16.mxu0 0
    %165 = vmatpush2.bf16.msra.mxu0 0
    %166 = vmatprep.mubr.bf16.mxu0 0
    %167 = vmatmul.mubr.bf16.gmra.mxu0 %v63
    %v168 = vpop.f32.mrf.mxu0
    %v169 = vadd.f32 %v84, %v168
    %v170 = vpop.f32.mrf.mxu0
    %v171 = vpop.f32.mrf.mxu0
    %v172 = vpop.f32.mrf.mxu0
    %173 = vdwg.mxu0
    %v174 = vmax.f32 %v169, 0.0
    %v175 = vpack.c.bf16 %v174, %v174
    %v176 = vld [vmem:[#allocation7] sm:$0xf]
    %v177 = vld [vmem:[#allocation7 + $0x4] sm:$0xf]
    %v178 = vld [vmem:[#allocation7 + $0x8] sm:$0xf]
    %v179 = vld [vmem:[#allocation7 + $0xc] sm:$0xf]
    %v180 = vld [vmem:[#allocation7 + $0x10] sm:$0xf]
    %v181 = vld [vmem:[#allocation7 + $0x14] sm:$0xf]
    %v182 = vld [vmem:[#allocation7 + $0x18] sm:$0xf]
    %v183 = vld [vmem:[#allocation7 + $0x1c] sm:$0xf]
    %v184 = vld [vmem:[#allocation7 + $0x20] sm:$0xf]
    %v185 = vld [vmem:[#allocation7 + $0x24] sm:$0xf]
    %v186 = vld [vmem:[#allocation7 + $0x28] sm:$0xf]
    %v187 = vld [vmem:[#allocation7 + $0x2c] sm:$0xf]
    %v188 = vld [vmem:[#allocation7 + $0x30] sm:$0xf]
    %v189 = vld [vmem:[#allocation7 + $0x34] sm:$0xf]
    %v190 = vld [vmem:[#allocation7 + $0x38] sm:$0xf]
    %v191 = vld [vmem:[#allocation7 + $0x3c] sm:$0xf]
    %v193 = vlaneseq
    %v194 = vshrl.u32 %v193, 7
    %v195 = vsub.s32 0, %v194
    %v196 = vrot.slane %v62, %v195
    %v214 = vunpack.c.l.b16 %v176
    %v215 = vunpack.c.l.b16 %v177
    %v216 = vunpack.c.l.b16 %v178
    %v217 = vunpack.c.l.b16 %v179
    %v218 = vunpack.c.l.b16 %v180
    %v219 = vunpack.c.l.b16 %v181
    %v220 = vunpack.c.l.b16 %v182
    %v221 = vunpack.c.l.b16 %v183
    %v222 = vunpack.c.l.b16 %v184
    %v223 = vunpack.c.l.b16 %v185
    %v224 = vunpack.c.l.b16 %v186
    %v225 = vunpack.c.l.b16 %v187
    %v226 = vunpack.c.l.b16 %v188
    %v227 = vunpack.c.l.b16 %v189
    %v228 = vunpack.c.l.b16 %v190
    %v229 = vunpack.c.l.b16 %v191
    %v230 = vpack.c.b16 %v215, %v214
    %v231 = vpack.c.b16 %v217, %v216
    %v232 = vpack.c.b16 %v219, %v218
    %v233 = vpack.c.b16 %v221, %v220
    %v234 = vpack.c.b16 %v223, %v222
    %v235 = vpack.c.b16 %v225, %v224
    %v236 = vpack.c.b16 %v227, %v226
    %v237 = vpack.c.b16 %v229, %v228
    %246 = vmatprep.subr.bf16.mxu0 0
    %247 = vmatpush1.bf16.msra.mxu0 %v237
    %248 = vmatprep.subr.bf16.mxu0 0
    %249 = vmatpush1.bf16.msra.mxu0 %v236
    %250 = vmatprep.subr.bf16.mxu0 0
    %251 = vmatpush1.bf16.msra.mxu0 %v235
    %252 = vmatprep.subr.bf16.mxu0 0
    %253 = vmatpush1.bf16.msra.mxu0 %v234
    %254 = vmatprep.subr.bf16.mxu0 0
    %255 = vmatpush1.bf16.msra.mxu0 %v233
    %256 = vmatprep.subr.bf16.mxu0 0
    %257 = vmatpush1.bf16.msra.mxu0 %v232
    %258 = vmatprep.subr.bf16.mxu0 0
    %259 = vmatpush1.bf16.msra.mxu0 %v231
    %260 = vmatprep.subr.bf16.mxu0 0
    %261 = vmatpush1.bf16.msra.mxu0 %v230
    %262 = vmatprep.subr.bf16.mxu0 0
    %263 = vmatpush2.bf16.msra.mxu0 0
    %264 = vmatprep.subr.bf16.mxu0 0
    %265 = vmatpush2.bf16.msra.mxu0 0
    %266 = vmatprep.subr.bf16.mxu0 0
    %267 = vmatpush2.bf16.msra.mxu0 0
    %268 = vmatprep.subr.bf16.mxu0 0
    %269 = vmatpush2.bf16.msra.mxu0 0
    %270 = vmatprep.subr.bf16.mxu0 0
    %271 = vmatpush2.bf16.msra.mxu0 0
    %272 = vmatprep.subr.bf16.mxu0 0
    %273 = vmatpush2.bf16.msra.mxu0 0
    %274 = vmatprep.subr.bf16.mxu0 0
    %275 = vmatpush2.bf16.msra.mxu0 0
    %276 = vmatprep.subr.bf16.mxu0 0
    %277 = vmatpush2.bf16.msra.mxu0 0
    %278 = vmatprep.mubr.bf16.mxu0 0
    %279 = vmatmul.mubr.bf16.gmra.mxu0 %v175
    %v280 = vpop.f32.mrf.mxu0
    %v281 = vadd.f32 %v196, %v280
    %v282 = vpop.f32.mrf.mxu0
    %v283 = vpop.f32.mrf.mxu0
    %v284 = vpop.f32.mrf.mxu0
    %285 = vdwg.mxu0
    %v286 = vsub.f32 0.0, %v281
    %v287 = vmul.f32 %v286, 1.442695
    %v288 = vpow.pop %v287
    %v289 = vadd.f32 %v288, 1.0
    %v290 = vrcp.pop %v289
    %291 = vst [vmem:[#allocation8] sm:$0xff] %v290
    // Predicated region
    $region34: #{tpu_custom_call.1} parent=1 // pred_check
      _
    $region35: #{tpu_custom_call.1} parent=1 // pred_check_branch
      %293 = sbr.rel (0) target = $region37
    $region36: #{tpu_custom_call.1} parent=1 // pred_region
      %s295 = ssub.s32 128, 128
      %296 = vsyncadd [#allocation4], %s295
      %s298 = sshll.u32 [#allocation8], 4
      %s299 = int_to_ptr.vmem [resolvable:$true] %s298
      %301 = dma.vmem_to_hbm [thread:$0]  %s299, 128, %s5, [#allocation4]
    $region37: #{tpu_custom_call.1} parent=1 // pred_fallthru
      _
    // Predicated region
    $region38: #{tpu_custom_call.1} parent=1 // pred_check
      _
    $region39: #{tpu_custom_call.1} parent=1 // pred_check_branch
      %303 = sbr.rel (0) target = $region41
    $region40: #{tpu_custom_call.1} parent=1 // pred_region
      %304 = dma.done [#allocation4], 128
    $region41: #{tpu_custom_call.1} parent=1 // pred_fallthru
      _
    %305 = vsyncpa [#allocation3], 1
    %306 = vsyncpa [#allocation6], 1
    %307 = vsyncpa [#allocation4], 1

</llo_original>
